<compile_context>
chip_gen: v5e
topology: v5e:2x2
jax: 0.10.0
libtpu: 0.0.40
codegen_flags: <defaults>
</compile_context>

<pallas_src>
import jax
import jax.numpy as jnp
from jax.experimental import pallas as pl
from jax.experimental.pallas import tpu as pltpu


def _round_up(x, m):
    return ((x + m - 1) // m) * m


# ----------------------------- Pallas kernel -------------------------------- #
def _mlp_kernel(x1_ref, x2_ref, w1a_ref, w1b_ref, b1_ref, w2_ref, b2_ref, o_ref):
    """out = relu(x1 @ W1[:F] + x2 @ W1[F:] + b1) @ W2 + b2  (split-K == concat)."""
    h = jnp.dot(x1_ref[...], w1a_ref[...], preferred_element_type=jnp.float32)
    h = h + jnp.dot(x2_ref[...], w1b_ref[...], preferred_element_type=jnp.float32)
    h = jnp.maximum(h + b1_ref[...], 0.0)                       # [tm, Hp] f32
    o = jnp.dot(h.astype(jnp.bfloat16), w2_ref[...],
                preferred_element_type=jnp.float32)              # [tm, Op] f32
    o_ref[...] = (o + b2_ref[...]).astype(o_ref.dtype)


def mlp_pallas(x1, x2, w1a, w1b, b1, w2, b2, *, tm):
    """Fused 2-layer MLP over a 1-D row grid.  Weights/biases are VMEM-resident
    (their index_map always returns block (0, 0)); x1/x2/out are pipelined per
    row tile (double-buffered by the BlockSpec pipeline)."""
    M, F = x1.shape
    Hp = w1a.shape[1]
    Op = w2.shape[1]
    assert M % tm == 0

    resident = lambda shape: pl.BlockSpec(shape, lambda i: (0, 0))
    return pl.pallas_call(
        _mlp_kernel,
        out_shape=jax.ShapeDtypeStruct((M, Op), jnp.float32),
        grid=(M // tm,),
        in_specs=[
            pl.BlockSpec((tm, F), lambda i: (i, 0)),   # x1: rows i*tm ...
            pl.BlockSpec((tm, F), lambda i: (i, 0)),   # x2: shifted rows (built in wrapper)
            resident((F, Hp)),                         # W1[:F]
            resident((F, Hp)),                         # W1[F:]
            resident((1, Hp)),                         # b1
            resident((Hp, Op)),                        # W2
            resident((1, Op)),                         # b2
        ],
        out_specs=pl.BlockSpec((tm, Op), lambda i: (i, 0)),
        compiler_params=pltpu.CompilerParams(
            # Row tiles are independent -> shard across TCs on v7x
            # (harmless single-core loop on v5e/v6e).
            dimension_semantics=("parallel",),
            # Tiles are sized well under the default scoped VMEM limit on all
            # of v5e/v6e/v7x; no override needed at these shapes.
        ),
    )(x1, x2, w1a, w1b, b1, w2, b2)


# --------------------------- Featurizer (glue) ------------------------------ #
def featurize_states(states, vocab_size):
    """states: int32 [B, L] token ids -> one-hot [B, L*vocab_size].
    Equivalent of `utils.batch([featurizer(s) for s in batch])`."""
    B, L = states.shape
    onehot = jax.nn.one_hot(states, vocab_size, dtype=jnp.float32)
    return onehot.reshape(B, L * vocab_size)


# --------------------------- Module forward --------------------------------- #
def state_featurize_wrap_two_forward(batch_states, batch2_states, params, vocab_size):
    """Pallas/JAX equivalent of StateFeaturizeWrap_two.forward.

    The PyTorch code featurizes `batch` twice (ignoring `batch2`), so inp2 == inp;
    we featurize once.  torch.no_grad() on the featurization -> stop_gradient.
    """
    feat = jax.lax.stop_gradient(featurize_states(batch_states, vocab_size))
    feat = feat.astype(jnp.bfloat16)          # one-hot is exact in bf16
    B, F = feat.shape
    M = B - 1

    w1, b1, w2, b2 = params
    H = w1.shape[1]
    O = w2.shape[1]

    # Row tile: largest 8-aligned tile up to 512 rows (amortizes the ~0.35us
    # per-grid-step overhead while staying tiny in VMEM).
    tm = min(512, _round_up(max(M, 1), 8))
    M_pad = _round_up(max(M, 1), tm)

    # Shifted row views instead of the [M, 2F] concat: x1[i] = feat[i], x2[i] = feat[i+1].
    x1 = jnp.zeros((M_pad, F), jnp.bfloat16).at[:M].set(feat[:M])
    x2 = jnp.zeros((M_pad, F), jnp.bfloat16).at[:M].set(feat[1:B])

    # Pad hidden/output widths to 128 lanes (zero padding is inert; sliced off below)
    # so the intermediate matmul and the output store are lane-dense.
    Hp = _round_up(H, 128)
    Op = _round_up(O, 128)
    w1_bf = w1.astype(jnp.bfloat16)
    w1a = jnp.zeros((F, Hp), jnp.bfloat16).at[:, :H].set(w1_bf[:F])
    w1b = jnp.zeros((F, Hp), jnp.bfloat16).at[:, :H].set(w1_bf[F:])
    b1p = jnp.zeros((1, Hp), jnp.float32).at[:, :H].set(b1.reshape(1, H))
    w2p = jnp.zeros((Hp, Op), jnp.bfloat16).at[:H, :O].set(w2.astype(jnp.bfloat16))
    b2p = jnp.zeros((1, Op), jnp.float32).at[:, :O].set(b2.reshape(1, O))

    out = mlp_pallas(x1, x2, w1a, w1b, b1p, w2p, b2p, tm=tm)    # [M_pad, Op]
    return out[:M, :O]                                           # [B-1, O]


# ------------------------------- Reference ---------------------------------- #
def reference_forward(batch_states, params, vocab_size):
    """Mirrors the module math with the same bf16-weight / f32-accumulate numerics."""
    w1, b1, w2, b2 = params
    feat = featurize_states(batch_states, vocab_size).astype(jnp.bfloat16)
    x = jnp.concatenate([feat[:-1], feat[1:]], axis=-1)
    h = jnp.dot(x, w1.astype(jnp.bfloat16), preferred_element_type=jnp.float32)
    h = jnp.maximum(h + b1.reshape(1, -1), 0.0).astype(jnp.bfloat16)
    o = jnp.dot(h, w2.astype(jnp.bfloat16), preferred_element_type=jnp.float32)
    return o + b2.reshape(1, -1)


if __name__ == "__main__":
    # Small shapes: batch of B=8 states, each a length-L=8 sequence over V=4 tokens.
    B, L, V = 8, 8, 4
    F = L * V          # 32 features per state
    H = 32             # hidden width of the wrapped net
    O = 16             # output width of the wrapped net

    key = jax.random.PRNGKey(0)
    k_states, k_w1, k_b1, k_w2, k_b2 = jax.random.split(key, 5)

    batch_states = jax.random.randint(k_states, (B, L), 0, V, dtype=jnp.int32)
    batch2_states = batch_states  # unused by the reference forward (it re-reads `batch`)

    w1 = jax.random.normal(k_w1, (2 * F, H), dtype=jnp.float32) * 0.1
    b1 = jax.random.normal(k_b1, (1, H), dtype=jnp.float32) * 0.1
    w2 = jax.random.normal(k_w2, (H, O), dtype=jnp.float32) * 0.1
    b2 = jax.random.normal(k_b2, (1, O), dtype=jnp.float32) * 0.1
    params = (w1, b1, w2, b2)

    out = state_featurize_wrap_two_forward(batch_states, batch2_states, params, V)
    out = jax.block_until_ready(out)

    ref = reference_forward(batch_states, params, V)
    assert out.shape == (B - 1, O), out.shape
    assert jnp.allclose(out, ref, atol=1e-3, rtol=1e-3), "mismatch vs reference"

    print("KERNEL_OK")
</pallas_src>

<mosaic_0001>
module attributes {stable_mosaic.version = 11 : i64} {
  func.func @_mlp_kernel(%arg0: i32, %arg1: memref<8x32xbf16, #tpu.memory_space<vmem>>, %arg2: memref<8x32xbf16, #tpu.memory_space<vmem>>, %arg3: memref<32x128xbf16, #tpu.memory_space<vmem>>, %arg4: memref<32x128xbf16, #tpu.memory_space<vmem>>, %arg5: memref<1x128xf32, #tpu.memory_space<vmem>>, %arg6: memref<128x128xbf16, #tpu.memory_space<vmem>>, %arg7: memref<1x128xf32, #tpu.memory_space<vmem>>, %arg8: memref<8x128xf32, #tpu.memory_space<vmem>>) attributes {dimension_semantics = [#tpu.dimension_semantics<parallel>], iteration_bounds = array<i64: 1>, scalar_prefetch = 0 : i64, scratch_operands = 0 : i64, tpu.core_type = #tpu.core_type<tc>, window_params = [{transform_indices = @transform_0, window_bounds = array<i64: 8, 32>}, {transform_indices = @transform_1, window_bounds = array<i64: 8, 32>}, {pipeline_mode = #tpu.pipeline_mode<synchronous>, transform_indices = @transform_2, window_bounds = array<i64: 32, 128>}, {pipeline_mode = #tpu.pipeline_mode<synchronous>, transform_indices = @transform_3, window_bounds = array<i64: 32, 128>}, {pipeline_mode = #tpu.pipeline_mode<synchronous>, transform_indices = @transform_4, window_bounds = array<i64: 1, 128>}, {pipeline_mode = #tpu.pipeline_mode<synchronous>, transform_indices = @transform_5, window_bounds = array<i64: 128, 128>}, {pipeline_mode = #tpu.pipeline_mode<synchronous>, transform_indices = @transform_6, window_bounds = array<i64: 1, 128>}, {transform_indices = @transform_7, window_bounds = array<i64: 8, 128>}]} {
    %c0 = arith.constant 0 : index
    %c0_0 = arith.constant 0 : index
    %0 = vector.load %arg1[%c0, %c0_0] : memref<8x32xbf16, #tpu.memory_space<vmem>>, vector<8x32xbf16>
    %c0_1 = arith.constant 0 : index
    %c0_2 = arith.constant 0 : index
    %1 = vector.load %arg3[%c0_1, %c0_2] : memref<32x128xbf16, #tpu.memory_space<vmem>>, vector<32x128xbf16>
    %cst = arith.constant dense<0.000000e+00> : vector<8x128xf32>
    %2 = tpu.matmul %0, %1, %cst {dimension_numbers = #tpu.dot_dimension_numbers<[1], [0], [0], [1], [0, 0, 1, 1], [], []>} : vector<8x32xbf16>, vector<32x128xbf16>, vector<8x128xf32> -> vector<8x128xf32>
    %c0_3 = arith.constant 0 : index
    %c0_4 = arith.constant 0 : index
    %3 = vector.load %arg2[%c0_3, %c0_4] : memref<8x32xbf16, #tpu.memory_space<vmem>>, vector<8x32xbf16>
    %c0_5 = arith.constant 0 : index
    %c0_6 = arith.constant 0 : index
    %4 = vector.load %arg4[%c0_5, %c0_6] : memref<32x128xbf16, #tpu.memory_space<vmem>>, vector<32x128xbf16>
    %cst_7 = arith.constant dense<0.000000e+00> : vector<8x128xf32>
    %5 = tpu.matmul %3, %4, %cst_7 {dimension_numbers = #tpu.dot_dimension_numbers<[1], [0], [0], [1], [0, 0, 1, 1], [], []>} : vector<8x32xbf16>, vector<32x128xbf16>, vector<8x128xf32> -> vector<8x128xf32>
    %6 = arith.addf %2, %5 : vector<8x128xf32>
    %c0_8 = arith.constant 0 : index
    %c0_9 = arith.constant 0 : index
    %7 = vector.load %arg5[%c0_8, %c0_9] : memref<1x128xf32, #tpu.memory_space<vmem>>, vector<1x128xf32>
    %8 = vector.broadcast %7 : vector<1x128xf32> to vector<8x128xf32>
    %9 = arith.addf %6, %8 : vector<8x128xf32>
    %cst_10 = arith.constant 0.000000e+00 : f32
    %10 = vector.broadcast %cst_10 : f32 to vector<8x128xf32>
    %11 = arith.maximumf %9, %10 : vector<8x128xf32>
    %12 = arith.truncf %11 : vector<8x128xf32> to vector<8x128xbf16>
    %c0_11 = arith.constant 0 : index
    %c0_12 = arith.constant 0 : index
    %13 = vector.load %arg6[%c0_11, %c0_12] : memref<128x128xbf16, #tpu.memory_space<vmem>>, vector<128x128xbf16>
    %cst_13 = arith.constant dense<0.000000e+00> : vector<8x128xf32>
    %14 = tpu.matmul %12, %13, %cst_13 {dimension_numbers = #tpu.dot_dimension_numbers<[1], [0], [0], [1], [0, 0, 1, 1], [], []>} : vector<8x128xbf16>, vector<128x128xbf16>, vector<8x128xf32> -> vector<8x128xf32>
    %c0_14 = arith.constant 0 : index
    %c0_15 = arith.constant 0 : index
    %15 = vector.load %arg7[%c0_14, %c0_15] : memref<1x128xf32, #tpu.memory_space<vmem>>, vector<1x128xf32>
    %16 = vector.broadcast %15 : vector<1x128xf32> to vector<8x128xf32>
    %17 = arith.addf %14, %16 : vector<8x128xf32>
    %c0_16 = arith.constant 0 : index
    %c0_17 = arith.constant 0 : index
    %18 = vector.load %arg8[%c0_16, %c0_17] : memref<8x128xf32, #tpu.memory_space<vmem>>, vector<8x128xf32>
    tpu.vector_store %arg8[%c0_16, %c0_17], %17 {strides = array<i32>} : memref<8x128xf32, #tpu.memory_space<vmem>>, vector<8x128xf32>,
    return
  }
  func.func @transform_0(%arg0: i32) -> (i32, i32) {
    %c0_i32 = arith.constant 0 : i32
    %c0_i32_0 = arith.constant 0 : i32
    return %arg0, %c0_i32 : i32, i32
  }
  func.func @transform_1(%arg0: i32) -> (i32, i32) {
    %c0_i32 = arith.constant 0 : i32
    %c0_i32_0 = arith.constant 0 : i32
    return %arg0, %c0_i32 : i32, i32
  }
  func.func @transform_2(%arg0: i32) -> (i32, i32) {
    %c0_i32 = arith.constant 0 : i32
    %c0_i32_0 = arith.constant 0 : i32
    %c0_i32_1 = arith.constant 0 : i32
    return %c0_i32, %c0_i32_0 : i32, i32
  }
  func.func @transform_3(%arg0: i32) -> (i32, i32) {
    %c0_i32 = arith.constant 0 : i32
    %c0_i32_0 = arith.constant 0 : i32
    %c0_i32_1 = arith.constant 0 : i32
    return %c0_i32, %c0_i32_0 : i32, i32
  }
  func.func @transform_4(%arg0: i32) -> (i32, i32) {
    %c0_i32 = arith.constant 0 : i32
    %c0_i32_0 = arith.constant 0 : i32
    %c0_i32_1 = arith.constant 0 : i32
    return %c0_i32, %c0_i32_0 : i32, i32
  }
  func.func @transform_5(%arg0: i32) -> (i32, i32) {
    %c0_i32 = arith.constant 0 : i32
    %c0_i32_0 = arith.constant 0 : i32
    %c0_i32_1 = arith.constant 0 : i32
    return %c0_i32, %c0_i32_0 : i32, i32
  }
  func.func @transform_6(%arg0: i32) -> (i32, i32) {
    %c0_i32 = arith.constant 0 : i32
    %c0_i32_0 = arith.constant 0 : i32
    %c0_i32_1 = arith.constant 0 : i32
    return %c0_i32, %c0_i32_0 : i32, i32
  }
  func.func @transform_7(%arg0: i32) -> (i32, i32) {
    %c0_i32 = arith.constant 0 : i32
    %c0_i32_0 = arith.constant 0 : i32
    return %arg0, %c0_i32 : i32, i32
  }
}

</mosaic_0001>

<llo_original>
// kernel: tpu_custom_call.1
$region0: #{tpu_custom_call.1}
  #allocation0 [shape = 'u32[]', space=smem, size = 0x4, offset = 0x4, fixed_abs, tag = 'smem constant byte address 0x4 - core index']
  #allocation1 [shape = 'u32[72,128]{1,0:T(1,128)}', space=vmem, size = 0x9000, scoped, tag = 'internal scratch']
  %s0 = inlined_call_operand.hbm [shape: bf16[8,32], index: 0, kind: input, shape index: {}]
  %s1 = inlined_call_operand.hbm [shape: bf16[8,32], index: 1, kind: input, shape index: {}]
  %s2 = inlined_call_operand.hbm [shape: bf16[32,128], index: 2, kind: input, shape index: {}]
  %s3 = inlined_call_operand.hbm [shape: bf16[32,128], index: 3, kind: input, shape index: {}]
  %s4 = inlined_call_operand.vmem [shape: f32[1,128], index: 4, kind: input, shape index: {}]
  %s5 = inlined_call_operand.hbm [shape: bf16[128,128], index: 5, kind: input, shape index: {}]
  %s6 = inlined_call_operand.vmem [shape: f32[1,128], index: 6, kind: input, shape index: {}]
  %s7 = inlined_call_operand.hbm [shape: f32[8,128], index: 7, kind: output, shape index: {}]
  %s8 = sld [smem:[#allocation0]]
  $region58: #{tpu_custom_call.1} parent=0
    _
  %s10 = ssub.s32 1, %s8
  %s11 = scalar_select 0, %s10, %s8
  $region1: #{tpu_custom_call.1} parent=0
    #allocation2 [shape = 'u8[2048]{0}', space=vmem, size = 0x800, scoped, tag = 'input window, operand 0, single buffered']
    #allocation3 [shape = 's32[1]{0}', space=sflag, size = 0x4, scoped, tag = 'scoped memory for tpu_custom_call.1']
    #allocation4 [shape = 's32[1]{0}', space=sflag, size = 0x4, scoped, tag = 'scoped memory for tpu_custom_call.1']
    #allocation5 [shape = 'u8[2048]{0}', space=vmem, size = 0x800, scoped, tag = 'input window, operand 1, single buffered']
    #allocation6 [shape = 's32[1]{0}', space=sflag, size = 0x4, scoped, tag = 'scoped memory for tpu_custom_call.1']
    #allocation7 [shape = 'u8[8192]{0}', space=vmem, size = 0x2000, scoped, tag = 'input window, operand 2, single buffered']
    #allocation8 [shape = 'u8[8192]{0}', space=vmem, size = 0x2000, scoped, tag = 'input window, operand 3, single buffered']
    #allocation9 [shape = 's32[1]{0}', space=sflag, size = 0x4, scoped, tag = 'scoped memory for tpu_custom_call.1']
    #allocation10 [shape = 'u8[32768]{0}', space=vmem, size = 0x8000, scoped, tag = 'input window, operand 5, single buffered']
    #allocation11 [shape = 'u8[4096]{0}', space=vmem, size = 0x1000, scoped, tag = 'output window, operand 0, single buffered']
    %12 = vsyncpa [#allocation3], 0
    %13 = vsyncpa [#allocation6], 0
    %14 = vsyncpa [#allocation9], 0
    %15 = vsyncpa [#allocation4], 0
    // Predicated region
    $region2: #{tpu_custom_call.1} parent=1 // pred_check
      _
    $region3: #{tpu_custom_call.1} parent=1 // pred_check_branch
      %17 = sbr.rel (0) target = $region5
    $region4: #{tpu_custom_call.1} parent=1 // pred_region
      %19 = vsyncadd [#allocation3], 0
      %s21 = sshll.u32 %s0, 4
      %s22 = int_to_ptr.hbm [resolvable:$true] %s21
      %s23 = sshll.u32 [#allocation2], 4
      %s24 = int_to_ptr.vmem [resolvable:$true] %s23
      %26 = dma.hbm_to_vmem [thread:$0]  %s22, 64, %s24, [#allocation3]
    $region5: #{tpu_custom_call.1} parent=1 // pred_fallthru
      _
    // Predicated region
    $region6: #{tpu_custom_call.1} parent=1 // pred_check
      _
    $region7: #{tpu_custom_call.1} parent=1 // pred_check_branch
      %28 = sbr.rel (0) target = $region9
    $region8: #{tpu_custom_call.1} parent=1 // pred_region
      %30 = vsyncadd [#allocation6], 0
      %s32 = sshll.u32 %s1, 4
      %s33 = int_to_ptr.hbm [resolvable:$true] %s32
      %s34 = sshll.u32 [#allocation5], 4
      %s35 = int_to_ptr.vmem [resolvable:$true] %s34
      %37 = dma.hbm_to_vmem [thread:$0]  %s33, 64, %s35, [#allocation6]
    $region9: #{tpu_custom_call.1} parent=1 // pred_fallthru
      _
    // Predicated region
    $region10: #{tpu_custom_call.1} parent=1 // pred_check
      _
    $region11: #{tpu_custom_call.1} parent=1 // pred_check_branch
      %39 = sbr.rel (0) target = $region13
    $region12: #{tpu_custom_call.1} parent=1 // pred_region
      %41 = vsyncadd [#allocation6], 0
      %s42 = sshll.u32 %s2, 4
      %s43 = int_to_ptr.hbm [resolvable:$true] %s42
      %s44 = sshll.u32 [#allocation7], 4
      %s45 = int_to_ptr.vmem [resolvable:$true] %s44
      %50 = dma.hbm_to_vmem [thread:$0]  %s43, 256, %s45, [#allocation6], 64, 64, 4
    $region13: #{tpu_custom_call.1} parent=1 // pred_fallthru
      _
    // Predicated region
    $region14: #{tpu_custom_call.1} parent=1 // pred_check
      _
    $region15: #{tpu_custom_call.1} parent=1 // pred_check_branch
      %52 = sbr.rel (0) target = $region17
    $region16: #{tpu_custom_call.1} parent=1 // pred_region
      %54 = vsyncadd [#allocation9], 0
      %s55 = sshll.u32 %s3, 4
      %s56 = int_to_ptr.hbm [resolvable:$true] %s55
      %s57 = sshll.u32 [#allocation8], 4
      %s58 = int_to_ptr.vmem [resolvable:$true] %s57
      %63 = dma.hbm_to_vmem [thread:$0]  %s56, 256, %s58, [#allocation9], 64, 64, 4
    $region17: #{tpu_custom_call.1} parent=1 // pred_fallthru
      _
    // Predicated region
    $region18: #{tpu_custom_call.1} parent=1 // pred_check
      _
    $region19: #{tpu_custom_call.1} parent=1 // pred_check_branch
      %65 = sbr.rel (0) target = $region21
    $region20: #{tpu_custom_call.1} parent=1 // pred_region
      _
    $region21: #{tpu_custom_call.1} parent=1 // pred_fallthru
      _
    // Predicated region
    $region22: #{tpu_custom_call.1} parent=1 // pred_check
      _
    $region23: #{tpu_custom_call.1} parent=1 // pred_check_branch
      %67 = sbr.rel (0) target = $region25
    $region24: #{tpu_custom_call.1} parent=1 // pred_region
      %69 = vsyncadd [#allocation9], 0
      %s70 = sshll.u32 %s5, 4
      %s71 = int_to_ptr.hbm [resolvable:$true] %s70
      %s72 = sshll.u32 [#allocation10], 4
      %s73 = int_to_ptr.vmem [resolvable:$true] %s72
      %78 = dma.hbm_to_vmem [thread:$0]  %s71, 1024, %s73, [#allocation9], 64, 64, 4
    $region25: #{tpu_custom_call.1} parent=1 // pred_fallthru
      _
    // Predicated region
    $region26: #{tpu_custom_call.1} parent=1 // pred_check
      _
    $region27: #{tpu_custom_call.1} parent=1 // pred_check_branch
      %80 = sbr.rel (0) target = $region29
    $region28: #{tpu_custom_call.1} parent=1 // pred_region
      _
    $region29: #{tpu_custom_call.1} parent=1 // pred_fallthru
      _
    // Predicated region
    $region30: #{tpu_custom_call.1} parent=1 // pred_check
      _
    $region31: #{tpu_custom_call.1} parent=1 // pred_check_branch
      %82 = sbr.rel (0) target = $region33
    $region32: #{tpu_custom_call.1} parent=1 // pred_region
      %84 = dma.done [#allocation3], 64
    $region33: #{tpu_custom_call.1} parent=1 // pred_fallthru
      _
    // Predicated region
    $region34: #{tpu_custom_call.1} parent=1 // pred_check
      _
    $region35: #{tpu_custom_call.1} parent=1 // pred_check_branch
      %86 = sbr.rel (0) target = $region37
    $region36: #{tpu_custom_call.1} parent=1 // pred_region
      %88 = dma.done [#allocation6], 64
    $region37: #{tpu_custom_call.1} parent=1 // pred_fallthru
      _
    // Predicated region
    $region38: #{tpu_custom_call.1} parent=1 // pred_check
      _
    $region39: #{tpu_custom_call.1} parent=1 // pred_check_branch
      %90 = sbr.rel (0) target = $region41
    $region40: #{tpu_custom_call.1} parent=1 // pred_region
      %92 = dma.done [#allocation6], 256
    $region41: #{tpu_custom_call.1} parent=1 // pred_fallthru
      _
    // Predicated region
    $region42: #{tpu_custom_call.1} parent=1 // pred_check
      _
    $region43: #{tpu_custom_call.1} parent=1 // pred_check_branch
      %94 = sbr.rel (0) target = $region45
    $region44: #{tpu_custom_call.1} parent=1 // pred_region
      %96 = dma.done [#allocation9], 256
    $region45: #{tpu_custom_call.1} parent=1 // pred_fallthru
      _
    // Predicated region
    $region46: #{tpu_custom_call.1} parent=1 // pred_check
      _
    $region47: #{tpu_custom_call.1} parent=1 // pred_check_branch
      %98 = sbr.rel (0) target = $region49
    $region48: #{tpu_custom_call.1} parent=1 // pred_region
      %100 = dma.done [#allocation9], 1024
    $region49: #{tpu_custom_call.1} parent=1 // pred_fallthru
      _
    %v102 = vld [vmem:[#allocation2] sm:$0xf]
    %v103 = vld [vmem:[#allocation7] sm:$0xf]
    %v104 = vld [vmem:[#allocation7 + $0x4] sm:$0xf]
    %v105 = vld [vmem:[#allocation7 + $0x8] sm:$0xf]
    %v106 = vld [vmem:[#allocation7 + $0xc] sm:$0xf]
    %v107 = vld [vmem:[#allocation5] sm:$0xf]
    %v108 = vld [vmem:[#allocation8] sm:$0xf]
    %v109 = vld [vmem:[#allocation8 + $0x4] sm:$0xf]
    %v110 = vld [vmem:[#allocation8 + $0x8] sm:$0xf]
    %v111 = vld [vmem:[#allocation8 + $0xc] sm:$0xf]
    %v116 = vunpack.c.l.b16 %v108
    %v117 = vunpack.c.l.b16 %v109
    %v118 = vunpack.c.l.b16 %v110
    %v119 = vunpack.c.l.b16 %v111
    %v120 = vpack.c.b16 %v117, %v116
    %v121 = vpack.c.b16 %v119, %v118
    %vm124 = vcmask 261120
    %v126 = vsel %vm124, %v107, 0
    %128 = vmatpush.bf16.msra.mxu0 0
    %129 = vmatpush.bf16.msra.mxu0 0
    %130 = vmatpush.bf16.msra.mxu0 0
    %131 = vmatpush.bf16.msra.mxu0 0
    %132 = vmatpush.bf16.msra.mxu0 0
    %133 = vmatpush.bf16.msra.mxu0 0
    %134 = vmatpush.bf16.msra.mxu0 %v121
    %135 = vmatpush.bf16.msra.mxu0 %v120
    %136 = vmatmul.bf16.gmra.mxu0 %v126
    %v137 = vpop.f32.mrf.mxu0
    %v138 = vadd.f32 0.0, %v137
    %v139 = vpop.f32.mrf.mxu0
    %140 = vdwg.mxu0
    %v145 = vunpack.c.l.b16 %v103
    %v146 = vunpack.c.l.b16 %v104
    %v147 = vunpack.c.l.b16 %v105
    %v148 = vunpack.c.l.b16 %v106
    %v149 = vpack.c.b16 %v146, %v145
    %v150 = vpack.c.b16 %v148, %v147
    %v154 = vsel %vm124, %v102, 0
    %156 = vmatpush.bf16.msra.mxu0 0
    %157 = vmatpush.bf16.msra.mxu0 0
    %158 = vmatpush.bf16.msra.mxu0 0
    %159 = vmatpush.bf16.msra.mxu0 0
    %160 = vmatpush.bf16.msra.mxu0 0
    %161 = vmatpush.bf16.msra.mxu0 0
    %162 = vmatpush.bf16.msra.mxu0 %v150
    %163 = vmatpush.bf16.msra.mxu0 %v149
    %164 = vmatmul.bf16.gmra.mxu0 %v154
    %v165 = vpop.f32.mrf.mxu0
    %v166 = vadd.f32 %v138, %v165
    %v167 = vpop.f32.mrf.mxu0
    %168 = vdwg.mxu0
    %v169 = vld [vmem:[%s4] sm:$0x1]
    %v171 = vperm.slane %v169, 0
    %v173 = vadd.f32 %v166, %v171
    %v174 = vmax.f32 %v173, 0.0
    %v175 = vpack.c.bf16 %v174, %v174
    %v176 = vld [vmem:[#allocation10] sm:$0xf]
    %v177 = vld [vmem:[#allocation10 + $0x4] sm:$0xf]
    %v178 = vld [vmem:[#allocation10 + $0x8] sm:$0xf]
    %v179 = vld [vmem:[#allocation10 + $0xc] sm:$0xf]
    %v180 = vld [vmem:[#allocation10 + $0x10] sm:$0xf]
    %v181 = vld [vmem:[#allocation10 + $0x14] sm:$0xf]
    %v182 = vld [vmem:[#allocation10 + $0x18] sm:$0xf]
    %v183 = vld [vmem:[#allocation10 + $0x1c] sm:$0xf]
    %v184 = vld [vmem:[#allocation10 + $0x20] sm:$0xf]
    %v185 = vld [vmem:[#allocation10 + $0x24] sm:$0xf]
    %v186 = vld [vmem:[#allocation10 + $0x28] sm:$0xf]
    %v187 = vld [vmem:[#allocation10 + $0x2c] sm:$0xf]
    %v188 = vld [vmem:[#allocation10 + $0x30] sm:$0xf]
    %v189 = vld [vmem:[#allocation10 + $0x34] sm:$0xf]
    %v190 = vld [vmem:[#allocation10 + $0x38] sm:$0xf]
    %v191 = vld [vmem:[#allocation10 + $0x3c] sm:$0xf]
    %v192 = vld [vmem:[%s6] sm:$0x1]
    %v194 = vperm.slane %v192, 0
    %v212 = vunpack.c.l.b16 %v176
    %v213 = vunpack.c.l.b16 %v177
    %v214 = vunpack.c.l.b16 %v178
    %v215 = vunpack.c.l.b16 %v179
    %v216 = vunpack.c.l.b16 %v180
    %v217 = vunpack.c.l.b16 %v181
    %v218 = vunpack.c.l.b16 %v182
    %v219 = vunpack.c.l.b16 %v183
    %v220 = vunpack.c.l.b16 %v184
    %v221 = vunpack.c.l.b16 %v185
    %v222 = vunpack.c.l.b16 %v186
    %v223 = vunpack.c.l.b16 %v187
    %v224 = vunpack.c.l.b16 %v188
    %v225 = vunpack.c.l.b16 %v189
    %v226 = vunpack.c.l.b16 %v190
    %v227 = vunpack.c.l.b16 %v191
    %v228 = vpack.c.b16 %v213, %v212
    %v229 = vpack.c.b16 %v215, %v214
    %v230 = vpack.c.b16 %v217, %v216
    %v231 = vpack.c.b16 %v219, %v218
    %v232 = vpack.c.b16 %v221, %v220
    %v233 = vpack.c.b16 %v223, %v222
    %v234 = vpack.c.b16 %v225, %v224
    %v235 = vpack.c.b16 %v227, %v226
    %244 = vmatpush.bf16.msra.mxu0 %v235
    %245 = vmatpush.bf16.msra.mxu0 %v234
    %246 = vmatpush.bf16.msra.mxu0 %v233
    %247 = vmatpush.bf16.msra.mxu0 %v232
    %248 = vmatpush.bf16.msra.mxu0 %v231
    %249 = vmatpush.bf16.msra.mxu0 %v230
    %250 = vmatpush.bf16.msra.mxu0 %v229
    %251 = vmatpush.bf16.msra.mxu0 %v228
    %252 = vmatmul.bf16.gmra.mxu0 %v175
    %v253 = vpop.f32.mrf.mxu0
    %v254 = vadd.f32 %v194, %v253
    %v255 = vpop.f32.mrf.mxu0
    %256 = vdwg.mxu0
    %257 = vst [vmem:[#allocation11] sm:$0xff] %v254
    // Predicated region
    $region50: #{tpu_custom_call.1} parent=1 // pred_check
      _
    $region51: #{tpu_custom_call.1} parent=1 // pred_check_branch
      %259 = sbr.rel (0) target = $region53
    $region52: #{tpu_custom_call.1} parent=1 // pred_region
      %261 = vsyncadd [#allocation4], 0
      %s263 = sshll.u32 [#allocation11], 4
      %s264 = int_to_ptr.vmem [resolvable:$true] %s263
      %s265 = sshll.u32 %s7, 4
      %s266 = int_to_ptr.hbm [resolvable:$true] %s265
      %268 = dma.vmem_to_hbm [thread:$0]  %s264, 128, %s266, [#allocation4]
    $region53: #{tpu_custom_call.1} parent=1 // pred_fallthru
      _
    // Predicated region
    $region54: #{tpu_custom_call.1} parent=1 // pred_check
      _
    $region55: #{tpu_custom_call.1} parent=1 // pred_check_branch
      %270 = sbr.rel (0) target = $region57
    $region56: #{tpu_custom_call.1} parent=1 // pred_region
      %272 = dma.done [#allocation4], 128
    $region57: #{tpu_custom_call.1} parent=1 // pred_fallthru
      _
    %273 = vsyncpa [#allocation3], 1
    %274 = vsyncpa [#allocation6], 1
    %275 = vsyncpa [#allocation9], 1
    %276 = vsyncpa [#allocation4], 1

</llo_original>
